<compile_context>
chip_gen: v7x
topology: tpu7x:2x2x1
jax: 0.10.0
libtpu: 0.0.40
codegen_flags: <defaults>
</compile_context>

<pallas_src>
import functools

import jax
import jax.numpy as jnp
from jax.experimental import pallas as pl
from jax.experimental.pallas import tpu as pltpu


def _round_up(x: int, m: int) -> int:
    return ((x + m - 1) // m) * m


def _cdiv(a: int, b: int) -> int:
    return (a + b - 1) // b


def qvalue_kernel(x_ref, w1_ref, b1_ref, w2_ref, b2_ref, w3_ref, b3_ref, o_ref):
    # x_ref:  (tb, F)  bf16      w1_ref: (F, H) bf16    b1_ref: (1, H) f32
    # w2_ref: (H, H)   bf16      b2_ref: (1, H) f32
    # w3_ref: (1, H)   f32 (transposed final weight)    b3_ref: (1, 1) f32 SMEM
    # o_ref:  (1, tb)  f32 (lane-dense output row)
    x = x_ref[...]

    # hidden1: single bf16 MXU dot over the fused [states; actions] features,
    # f32 accumulation, bias + relu in f32.
    h1 = jnp.dot(x, w1_ref[...], preferred_element_type=jnp.float32) + b1_ref[...]
    h1 = jnp.maximum(h1, 0.0)

    # hidden2: bf16 operands, f32 accumulation.
    h2 = (jnp.dot(h1.astype(jnp.bfloat16), w2_ref[...],
                  preferred_element_type=jnp.float32) + b2_ref[...])
    h2 = jnp.maximum(h2, 0.0)

    # q_value: (H -> 1) projection as a VPU multiply + XLU cross-lane reduce
    # (an N=1 MXU matmul would use 1/128 of the lanes).  b3 is a scalar in SMEM.
    q = jnp.sum(h2 * w3_ref[...], axis=-1) + b3_ref[0, 0]     # (tb,)
    o_ref[...] = q[None, :].astype(o_ref.dtype)               # (1, tb) dense row


@functools.partial(jax.jit, static_argnames=("tile_b",))
def qvalue_forward(states, actions, params, *, tile_b=1024):
    """Pallas-backed forward pass of QvalueNetwork.

    states:  (B, n_states)  float32
    actions: (B, n_actions) float32
    returns: (B, 1) float32
    """
    w1, b1, w2, b2, w3, b3 = params
    B, n_states = states.shape
    n_actions = actions.shape[1]
    H = w1.shape[1]
    F = n_states + n_actions

    # Fused input: one (B, F) operand, one (F, H) weight, single layer-1 dot.
    x = jnp.concatenate([states, actions], axis=1).astype(jnp.bfloat16)

    # bf16 matmul operands; biases and the final projection row stay f32.
    w1_bf = w1.astype(jnp.bfloat16)
    w2_bf = w2.astype(jnp.bfloat16)
    w3_row = jnp.reshape(w3, (1, H)).astype(jnp.float32)   # (H,1) -> (1,H)
    b3_s = jnp.reshape(b3, (1, 1)).astype(jnp.float32)     # scalar, SMEM

    # Batch tile: 128-aligned (lane-dense output row) and capped at tile_b.
    tb = min(_round_up(tile_b, 128), _round_up(max(B, 1), 128))
    # v7x megacore: prefer an even grid length so the "parallel" axis splits
    # evenly across both TensorCores (no-op on v5e/v6e single-core chips).
    n_tiles = _cdiv(B, tb)
    if n_tiles > 1 and n_tiles % 2 == 1 and tb >= 256:
        tb_half = _round_up(tb // 2, 128)
        if _cdiv(B, tb_half) % 2 == 0:
            tb = tb_half
    Bp = _round_up(max(B, tb), tb)
    if Bp != B:
        x = jnp.pad(x, ((0, Bp - B), (0, 0)))
    n_tiles = Bp // tb
    grid = (n_tiles,)

    const2d = lambda i: (0, 0)            # weights/biases resident across grid
    in_specs = [
        pl.BlockSpec((tb, F), lambda i: (i, 0)),   # fused [states; actions] tile
        pl.BlockSpec((F, H), const2d),             # w1 (bf16)
        pl.BlockSpec((1, H), const2d),             # b1 (f32)
        pl.BlockSpec((H, H), const2d),             # w2 (bf16)
        pl.BlockSpec((1, H), const2d),             # b2 (f32)
        pl.BlockSpec((1, H), const2d),             # w3 row (f32)
        pl.BlockSpec(memory_space=pltpu.SMEM),     # b3 scalar
    ]
    # Lane-dense output: one (1, tb) row per grid step; reshaped to (B,1) below.
    out_specs = pl.BlockSpec((1, tb), lambda i: (i, 0))

    flops = 2 * Bp * (F * H + H * H + H)
    bytes_accessed = (2 * (Bp * F + F * H + H * H)      # bf16 streams + weights
                      + 4 * (Bp + 3 * H + 1))           # f32 out, biases, w3, b3
    cost = pl.CostEstimate(flops=flops, transcendentals=0,
                           bytes_accessed=bytes_accessed)

    out_rows = pl.pallas_call(
        qvalue_kernel,
        out_shape=jax.ShapeDtypeStruct((n_tiles, tb), jnp.float32),
        grid=grid,
        in_specs=in_specs,
        out_specs=out_specs,
        compiler_params=pltpu.CompilerParams(
            dimension_semantics=("parallel",),
            vmem_limit_bytes=32 * 1024 * 1024),
        cost_estimate=cost,
    )(x, w1_bf, b1, w2_bf, b2, w3_row, b3_s)

    return jnp.reshape(out_rows, (Bp, 1))[:B]


def init_params(key, n_states, n_actions, n_hidden):
    """Deterministic init mirroring the PyTorch module's __init__:
    hidden1/hidden2: kaiming (He) normal weights, zero bias.
    q_value: xavier uniform weights, zero bias.
    Weights stored as (in_features, out_features) so the kernel does x @ W."""
    k1, k2, k3 = jax.random.split(key, 3)
    fan_in1 = n_states + n_actions
    fan_in2 = n_hidden
    fan_in3 = n_hidden
    fan_out3 = 1

    w1 = jax.random.normal(k1, (fan_in1, n_hidden), jnp.float32) * jnp.sqrt(2.0 / fan_in1)
    b1 = jnp.zeros((1, n_hidden), jnp.float32)

    w2 = jax.random.normal(k2, (fan_in2, n_hidden), jnp.float32) * jnp.sqrt(2.0 / fan_in2)
    b2 = jnp.zeros((1, n_hidden), jnp.float32)

    limit = jnp.sqrt(6.0 / (fan_in3 + fan_out3))
    w3 = jax.random.uniform(k3, (fan_in3, 1), jnp.float32, minval=-limit, maxval=limit)
    b3 = jnp.zeros((1, 1), jnp.float32)

    return (w1, b1, w2, b2, w3, b3)


def qvalue_ref(states, actions, params):
    """Pure-JAX f32 reference for correctness checking."""
    w1, b1, w2, b2, w3, b3 = params
    x = jnp.concatenate([states, actions], axis=1)
    h1 = jnp.maximum(x @ w1 + b1, 0.0)
    h2 = jnp.maximum(h1 @ w2 + b2, 0.0)
    return h2 @ w3 + b3


if __name__ == "__main__":
    n_states = 8
    n_actions = 2
    n_hidden = 256          # module default
    batch = 4               # small, non-multiple-of-128: exercises padding path

    key = jax.random.PRNGKey(0)
    k_params, k_states, k_actions = jax.random.split(key, 3)

    params = init_params(k_params, n_states, n_actions, n_hidden)
    states = jax.random.normal(k_states, (batch, n_states), jnp.float32)
    actions = jax.random.normal(k_actions, (batch, n_actions), jnp.float32)

    q = jax.block_until_ready(qvalue_forward(states, actions, params))
    q_ref = qvalue_ref(states, actions, params)
    assert q.shape == (batch, 1), q.shape
    # bf16 matmul operands with f32 accumulation -> loosened tolerance vs f32 ref.
    assert jnp.allclose(q, q_ref, atol=5e-2, rtol=5e-2), (q, q_ref)

    # Larger, tile-spanning batch to exercise the multi-tile pipelined grid path
    # (1500 rows -> two 1024-row tiles with a ragged zero-padded tail).
    k_s2, k_a2 = jax.random.split(jax.random.PRNGKey(1), 2)
    B2 = 1500
    states2 = jax.random.normal(k_s2, (B2, n_states), jnp.float32)
    actions2 = jax.random.normal(k_a2, (B2, n_actions), jnp.float32)
    q2 = jax.block_until_ready(qvalue_forward(states2, actions2, params))
    q2_ref = qvalue_ref(states2, actions2, params)
    assert q2.shape == (B2, 1), q2.shape
    assert jnp.allclose(q2, q2_ref, atol=5e-2, rtol=5e-2)

    print("KERNEL_OK")
</pallas_src>

<mosaic_0001>
module attributes {stable_mosaic.version = 11 : i64} {
  func.func @qvalue_kernel(%arg0: i32, %arg1: memref<128x10xbf16, #tpu.memory_space<vmem>>, %arg2: memref<10x256xbf16, #tpu.memory_space<vmem>>, %arg3: memref<1x256xf32, #tpu.memory_space<vmem>>, %arg4: memref<256x256xbf16, #tpu.memory_space<vmem>>, %arg5: memref<1x256xf32, #tpu.memory_space<vmem>>, %arg6: memref<1x256xf32, #tpu.memory_space<vmem>>, %arg7: memref<1x1xf32, #tpu.memory_space<smem>>, %arg8: memref<1x128xf32, #tpu.memory_space<vmem>>) attributes {dimension_semantics = [#tpu.dimension_semantics<parallel>], iteration_bounds = array<i64: 1>, scalar_prefetch = 0 : i64, scratch_operands = 0 : i64, tpu.core_type = #tpu.core_type<tc>, window_params = [{transform_indices = @transform_0, window_bounds = array<i64: 128, 10>}, {pipeline_mode = #tpu.pipeline_mode<synchronous>, transform_indices = @transform_1, window_bounds = array<i64: 10, 256>}, {pipeline_mode = #tpu.pipeline_mode<synchronous>, transform_indices = @transform_2, window_bounds = array<i64: 1, 256>}, {pipeline_mode = #tpu.pipeline_mode<synchronous>, transform_indices = @transform_3, window_bounds = array<i64: 256, 256>}, {pipeline_mode = #tpu.pipeline_mode<synchronous>, transform_indices = @transform_4, window_bounds = array<i64: 1, 256>}, {pipeline_mode = #tpu.pipeline_mode<synchronous>, transform_indices = @transform_5, window_bounds = array<i64: 1, 256>}, {transform_indices = @transform_6, window_bounds = array<i64: 1, 1>}, {transform_indices = @transform_7, window_bounds = array<i64: 1, 128>}]} {
    %c0 = arith.constant 0 : index
    %c0_0 = arith.constant 0 : index
    %0 = vector.load %arg1[%c0, %c0_0] : memref<128x10xbf16, #tpu.memory_space<vmem>>, vector<128x10xbf16>
    %c0_1 = arith.constant 0 : index
    %c0_2 = arith.constant 0 : index
    %1 = vector.load %arg2[%c0_1, %c0_2] : memref<10x256xbf16, #tpu.memory_space<vmem>>, vector<10x256xbf16>
    %cst = arith.constant dense<0.000000e+00> : vector<128x256xf32>
    %2 = tpu.matmul %0, %1, %cst {dimension_numbers = #tpu.dot_dimension_numbers<[1], [0], [0], [1], [0, 0, 1, 1], [], []>} : vector<128x10xbf16>, vector<10x256xbf16>, vector<128x256xf32> -> vector<128x256xf32>
    %c0_3 = arith.constant 0 : index
    %c0_4 = arith.constant 0 : index
    %3 = vector.load %arg3[%c0_3, %c0_4] : memref<1x256xf32, #tpu.memory_space<vmem>>, vector<1x256xf32>
    %4 = vector.broadcast %3 : vector<1x256xf32> to vector<128x256xf32>
    %5 = arith.addf %2, %4 : vector<128x256xf32>
    %cst_5 = arith.constant 0.000000e+00 : f32
    %6 = vector.broadcast %cst_5 : f32 to vector<128x256xf32>
    %7 = arith.maximumf %5, %6 : vector<128x256xf32>
    %8 = arith.truncf %7 : vector<128x256xf32> to vector<128x256xbf16>
    %c0_6 = arith.constant 0 : index
    %c0_7 = arith.constant 0 : index
    %9 = vector.load %arg4[%c0_6, %c0_7] : memref<256x256xbf16, #tpu.memory_space<vmem>>, vector<256x256xbf16>
    %cst_8 = arith.constant dense<0.000000e+00> : vector<128x256xf32>
    %10 = tpu.matmul %8, %9, %cst_8 {dimension_numbers = #tpu.dot_dimension_numbers<[1], [0], [0], [1], [0, 0, 1, 1], [], []>} : vector<128x256xbf16>, vector<256x256xbf16>, vector<128x256xf32> -> vector<128x256xf32>
    %c0_9 = arith.constant 0 : index
    %c0_10 = arith.constant 0 : index
    %11 = vector.load %arg5[%c0_9, %c0_10] : memref<1x256xf32, #tpu.memory_space<vmem>>, vector<1x256xf32>
    %12 = vector.broadcast %11 : vector<1x256xf32> to vector<128x256xf32>
    %13 = arith.addf %10, %12 : vector<128x256xf32>
    %cst_11 = arith.constant 0.000000e+00 : f32
    %14 = vector.broadcast %cst_11 : f32 to vector<128x256xf32>
    %15 = arith.maximumf %13, %14 : vector<128x256xf32>
    %c0_12 = arith.constant 0 : index
    %c0_13 = arith.constant 0 : index
    %16 = vector.load %arg6[%c0_12, %c0_13] : memref<1x256xf32, #tpu.memory_space<vmem>>, vector<1x256xf32>
    %17 = vector.broadcast %16 : vector<1x256xf32> to vector<128x256xf32>
    %18 = arith.mulf %15, %17 : vector<128x256xf32>
    %cst_14 = arith.constant dense<0.000000e+00> : vector<128xf32>
    %19 = vector.multi_reduction <add>, %18, %cst_14 [1] : vector<128x256xf32> to vector<128xf32>
    %c0_15 = arith.constant 0 : index
    %c0_16 = arith.constant 0 : index
    %20 = memref.load %arg7[%c0_15, %c0_16] : memref<1x1xf32, #tpu.memory_space<smem>>
    %21 = vector.broadcast %20 : f32 to vector<128xf32>
    %22 = arith.addf %19, %21 : vector<128xf32>
    %23 = vector.shape_cast %22 : vector<128xf32> to vector<1x128xf32>
    %c0_17 = arith.constant 0 : index
    %c0_18 = arith.constant 0 : index
    %24 = vector.load %arg8[%c0_17, %c0_18] : memref<1x128xf32, #tpu.memory_space<vmem>>, vector<1x128xf32>
    tpu.vector_store %arg8[%c0_17, %c0_18], %23 {strides = array<i32>} : memref<1x128xf32, #tpu.memory_space<vmem>>, vector<1x128xf32>,
    return
  }
  func.func @transform_0(%arg0: i32) -> (i32, i32) {
    %c0_i32 = arith.constant 0 : i32
    %c0_i32_0 = arith.constant 0 : i32
    return %arg0, %c0_i32 : i32, i32
  }
  func.func @transform_1(%arg0: i32) -> (i32, i32) {
    %c0_i32 = arith.constant 0 : i32
    %c0_i32_0 = arith.constant 0 : i32
    %c0_i32_1 = arith.constant 0 : i32
    return %c0_i32, %c0_i32_0 : i32, i32
  }
  func.func @transform_2(%arg0: i32) -> (i32, i32) {
    %c0_i32 = arith.constant 0 : i32
    %c0_i32_0 = arith.constant 0 : i32
    %c0_i32_1 = arith.constant 0 : i32
    return %c0_i32, %c0_i32_0 : i32, i32
  }
  func.func @transform_3(%arg0: i32) -> (i32, i32) {
    %c0_i32 = arith.constant 0 : i32
    %c0_i32_0 = arith.constant 0 : i32
    %c0_i32_1 = arith.constant 0 : i32
    return %c0_i32, %c0_i32_0 : i32, i32
  }
  func.func @transform_4(%arg0: i32) -> (i32, i32) {
    %c0_i32 = arith.constant 0 : i32
    %c0_i32_0 = arith.constant 0 : i32
    %c0_i32_1 = arith.constant 0 : i32
    return %c0_i32, %c0_i32_0 : i32, i32
  }
  func.func @transform_5(%arg0: i32) -> (i32, i32) {
    %c0_i32 = arith.constant 0 : i32
    %c0_i32_0 = arith.constant 0 : i32
    %c0_i32_1 = arith.constant 0 : i32
    return %c0_i32, %c0_i32_0 : i32, i32
  }
  func.func @transform_6(%arg0: i32) -> (i32, i32) {
    %c0_i32 = arith.constant 0 : i32
    %c0_i32_0 = arith.constant 0 : i32
    %c0_i32_1 = arith.constant 0 : i32
    return %c0_i32, %c0_i32_0 : i32, i32
  }
  func.func @transform_7(%arg0: i32) -> (i32, i32) {
    %c0_i32 = arith.constant 0 : i32
    %c0_i32_0 = arith.constant 0 : i32
    return %arg0, %c0_i32 : i32, i32
  }
}

</mosaic_0001>

<llo_original>
// kernel: qvalue_forward.1
$region0: #{qvalue_forward.1}
  #allocation0 [shape = 'u32[]', space=smem, size = 0x4, offset = 0x4, fixed_abs, tag = 'smem constant byte address 0x4 - core index']
  #allocation1 [shape = 'u32[144,128]{1,0:T(1,128)}', space=vmem, size = 0x12000, scoped, tag = 'internal scratch']
  #allocation2 [shape = 'f32[1,1]{1,0:T(1,128)S(6)}', space=smem, size = 0x200, scoped, tag = 'scoped memory for qvalue_forward.1']
  %s0 = inlined_call_operand.vmem [shape: bf16[128,10], index: 0, kind: input, shape index: {}]
  %s1 = inlined_call_operand.vmem [shape: bf16[10,256], index: 1, kind: input, shape index: {}]
  %s2 = inlined_call_operand.vmem [shape: f32[1,256], index: 2, kind: input, shape index: {}]
  %s3 = inlined_call_operand.vmem [shape: bf16[256,256], index: 3, kind: input, shape index: {}]
  %s4 = inlined_call_operand.vmem [shape: f32[1,256], index: 4, kind: input, shape index: {}]
  %s5 = inlined_call_operand.vmem [shape: f32[1,256], index: 5, kind: input, shape index: {}]
  %s6 = inlined_call_operand.<no memory space> [shape: f32[1,1], index: 6, kind: input, shape index: {}]
  %s7 = inlined_call_operand.vmem [shape: f32[1,128], index: 7, kind: output, shape index: {}]
  %s8 = sld [smem:[#allocation0]]
  $region38: #{qvalue_forward.1} parent=0
    _
  %s10 = ssub.s32 1, %s8
  %s11 = scalar_select 0, %s10, %s8
  %12 = sst [smem:[#allocation2]] %s6
  // Predicated region
  $region2: #{qvalue_forward.1} parent=0 // pred_check
    _
  $region3: #{qvalue_forward.1} parent=0 // pred_check_branch
    %14 = sbr.rel (0) target = $region5
  $region4: #{qvalue_forward.1} parent=0 // pred_region
    _
  $region5: #{qvalue_forward.1} parent=0 // pred_fallthru
    _
  // Predicated region
  $region6: #{qvalue_forward.1} parent=0 // pred_check
    _
  $region7: #{qvalue_forward.1} parent=0 // pred_check_branch
    %16 = sbr.rel (0) target = $region9
  $region8: #{qvalue_forward.1} parent=0 // pred_region
    _
  $region9: #{qvalue_forward.1} parent=0 // pred_fallthru
    _
  // Predicated region
  $region10: #{qvalue_forward.1} parent=0 // pred_check
    _
  $region11: #{qvalue_forward.1} parent=0 // pred_check_branch
    %18 = sbr.rel (0) target = $region13
  $region12: #{qvalue_forward.1} parent=0 // pred_region
    _
  $region13: #{qvalue_forward.1} parent=0 // pred_fallthru
    _
  // Predicated region
  $region14: #{qvalue_forward.1} parent=0 // pred_check
    _
  $region15: #{qvalue_forward.1} parent=0 // pred_check_branch
    %20 = sbr.rel (0) target = $region17
  $region16: #{qvalue_forward.1} parent=0 // pred_region
    _
  $region17: #{qvalue_forward.1} parent=0 // pred_fallthru
    _
  // Predicated region
  $region18: #{qvalue_forward.1} parent=0 // pred_check
    _
  $region19: #{qvalue_forward.1} parent=0 // pred_check_branch
    %22 = sbr.rel (0) target = $region21
  $region20: #{qvalue_forward.1} parent=0 // pred_region
    _
  $region21: #{qvalue_forward.1} parent=0 // pred_fallthru
    _
  // Predicated region
  $region22: #{qvalue_forward.1} parent=0 // pred_check
    _
  $region23: #{qvalue_forward.1} parent=0 // pred_check_branch
    %24 = sbr.rel (0) target = $region25
  $region24: #{qvalue_forward.1} parent=0 // pred_region
    _
  $region25: #{qvalue_forward.1} parent=0 // pred_fallthru
    _
  // Predicated region
  $region26: #{qvalue_forward.1} parent=0 // pred_check
    _
  $region27: #{qvalue_forward.1} parent=0 // pred_check_branch
    %26 = sbr.rel (0) target = $region29
  $region28: #{qvalue_forward.1} parent=0 // pred_region
    _
  $region29: #{qvalue_forward.1} parent=0 // pred_fallthru
    _
  %v28 = vld [vmem:[%s0] sm:$0xf]
  %v29 = vld [vmem:[%s0 + $0x4] sm:$0xf]
  %v30 = vld [vmem:[%s0 + $0x8] sm:$0xf]
  %v31 = vld [vmem:[%s0 + $0xc] sm:$0xf]
  %v32 = vld [vmem:[%s0 + $0x10] sm:$0xf]
  %v33 = vld [vmem:[%s0 + $0x14] sm:$0xf]
  %v34 = vld [vmem:[%s0 + $0x18] sm:$0xf]
  %v35 = vld [vmem:[%s0 + $0x1c] sm:$0xf]
  %v36 = vld [vmem:[%s0 + $0x20] sm:$0xf]
  %v37 = vld [vmem:[%s0 + $0x24] sm:$0xf]
  %v38 = vld [vmem:[%s0 + $0x28] sm:$0xf]
  %v39 = vld [vmem:[%s0 + $0x2c] sm:$0xf]
  %v40 = vld [vmem:[%s0 + $0x30] sm:$0xf]
  %v41 = vld [vmem:[%s0 + $0x34] sm:$0xf]
  %v42 = vld [vmem:[%s0 + $0x38] sm:$0xf]
  %v43 = vld [vmem:[%s0 + $0x3c] sm:$0xf]
  %v44 = vld [vmem:[%s1] sm:$0xff]
  %v45 = vld [vmem:[%s1 + $0x8] sm:$0x11]
  %v46 = vld [vmem:[%s2] sm:$0x3]
  %v48 = vlaneseq
  %v49 = vshrl.u32 %v48, 7
  %v50 = vsub.s32 0, %v49
  %v51 = vrot.slane %v46, %v50
  %v52 = vlaneseq
  %v53 = vshrl.u32 %v52, 7
  %v54 = vsub.s32 1, %v53
  %v55 = vrot.slane %v46, %v54
  %v74 = vunpack.c.l.b16 %v28
  %v75 = vunpack.c.l.b16 %v29
  %v76 = vunpack.c.l.b16 %v30
  %v77 = vunpack.c.l.b16 %v31
  %v78 = vunpack.c.l.b16 %v32
  %v79 = vunpack.c.l.b16 %v33
  %v80 = vunpack.c.l.b16 %v34
  %v81 = vunpack.c.l.b16 %v35
  %v82 = vunpack.c.l.b16 %v36
  %v83 = vunpack.c.l.b16 %v37
  %v84 = vunpack.c.l.b16 %v38
  %v85 = vunpack.c.l.b16 %v39
  %v86 = vunpack.c.l.b16 %v40
  %v87 = vunpack.c.l.b16 %v41
  %v88 = vunpack.c.l.b16 %v42
  %v89 = vunpack.c.l.b16 %v43
  %v90 = vpack.c.b16 %v75, %v74
  %v91 = vpack.c.b16 %v77, %v76
  %v92 = vpack.c.b16 %v79, %v78
  %v93 = vpack.c.b16 %v81, %v80
  %v94 = vpack.c.b16 %v83, %v82
  %v95 = vpack.c.b16 %v85, %v84
  %v96 = vpack.c.b16 %v87, %v86
  %v97 = vpack.c.b16 %v89, %v88
  %v100 = vunpack.c.l.b16 %v44
  %v101 = vunpack.c.h.b16 %v44
  %v102 = vunpack.c.l.b16 %v45
  %v103 = vunpack.c.h.b16 %v45
  %v104 = vpack.c.b16 %v102, %v100
  %v105 = vpack.c.b16 %v103, %v101
  %vm106 = vcmask 80896
  %v108 = vsel %vm106, %v90, 0
  %v111 = vsel %vm106, %v91, 0
  %v114 = vsel %vm106, %v92, 0
  %v117 = vsel %vm106, %v93, 0
  %v120 = vsel %vm106, %v94, 0
  %v123 = vsel %vm106, %v95, 0
  %v126 = vsel %vm106, %v96, 0
  %v129 = vsel %vm106, %v97, 0
  %vm131 = vcmask 1044480
  %v133 = vsel %vm131, %v104, 0
  %v136 = vsel %vm131, %v105, 0
  %138 = vmatprep.subr.bf16.mxu0 %v136
  %139 = vmatpush1.bf16.msra.mxu0 %v133
  %140 = vmatprep.subr.bf16.mxu0 0
  %141 = vmatpush1.bf16.msra.mxu0 0
  %142 = vmatprep.subr.bf16.mxu0 0
  %143 = vmatpush1.bf16.msra.mxu0 0
  %144 = vmatprep.subr.bf16.mxu0 0
  %145 = vmatpush1.bf16.msra.mxu0 0
  %146 = vmatprep.subr.bf16.mxu0 0
  %147 = vmatpush1.bf16.msra.mxu0 0
  %148 = vmatprep.subr.bf16.mxu0 0
  %149 = vmatpush1.bf16.msra.mxu0 0
  %150 = vmatprep.subr.bf16.mxu0 0
  %151 = vmatpush1.bf16.msra.mxu0 0
  %152 = vmatprep.subr.bf16.mxu0 0
  %153 = vmatpush1.bf16.msra.mxu0 0
  %154 = vmatprep.subr.bf16.mxu0 0
  %155 = vmatpush1.bf16.msra.mxu0 0
  %156 = vmatprep.subr.bf16.mxu0 0
  %157 = vmatpush1.bf16.msra.mxu0 0
  %158 = vmatprep.subr.bf16.mxu0 0
  %159 = vmatpush1.bf16.msra.mxu0 0
  %160 = vmatprep.subr.bf16.mxu0 0
  %161 = vmatpush1.bf16.msra.mxu0 0
  %162 = vmatprep.subr.bf16.mxu0 0
  %163 = vmatpush1.bf16.msra.mxu0 0
  %164 = vmatprep.subr.bf16.mxu0 0
  %165 = vmatpush1.bf16.msra.mxu0 0
  %166 = vmatprep.subr.bf16.mxu0 0
  %167 = vmatpush1.bf16.msra.mxu0 0
  %168 = vmatprep.subr.bf16.mxu0 0
  %169 = vmatpush1.bf16.msra.mxu0 0
  %170 = vmatprep.mubr.bf16.mxu0 0
  %171 = vmatmul.mubr.bf16.gmra.mrb[0].mxu0 %v108
  %v172 = vpop.f32.mrb[0].mxu0
  %v173 = vadd.f32 %v51, %v172
  %v174 = vpop.f32.mrb[0].mxu0
  %v175 = vadd.f32 %v55, %v174
  %v176 = vpop.f32.mrb[0].mxu0
  %v177 = vadd.f32 %v51, %v176
  %v178 = vpop.f32.mrb[0].mxu0
  %v179 = vadd.f32 %v55, %v178
  %180 = vmatprep.mubr.bf16.mxu0 0
  %181 = vmatmul.mubr.bf16.gmra.mrb[0].mxu0 %v111
  %v182 = vpop.f32.mrb[0].mxu0
  %v183 = vadd.f32 %v51, %v182
  %v184 = vpop.f32.mrb[0].mxu0
  %v185 = vadd.f32 %v55, %v184
  %v186 = vpop.f32.mrb[0].mxu0
  %v187 = vadd.f32 %v51, %v186
  %v188 = vpop.f32.mrb[0].mxu0
  %v189 = vadd.f32 %v55, %v188
  %190 = vmatprep.mubr.bf16.mxu0 0
  %191 = vmatmul.mubr.bf16.gmra.mrb[0].mxu0 %v114
  %v192 = vpop.f32.mrb[0].mxu0
  %v193 = vadd.f32 %v51, %v192
  %v194 = vpop.f32.mrb[0].mxu0
  %v195 = vadd.f32 %v55, %v194
  %v196 = vpop.f32.mrb[0].mxu0
  %v197 = vadd.f32 %v51, %v196
  %v198 = vpop.f32.mrb[0].mxu0
  %v199 = vadd.f32 %v55, %v198
  %200 = vmatprep.mubr.bf16.mxu0 0
  %201 = vmatmul.mubr.bf16.gmra.mrb[0].mxu0 %v117
  %v202 = vpop.f32.mrb[0].mxu0
  %v203 = vadd.f32 %v51, %v202
  %v204 = vpop.f32.mrb[0].mxu0
  %v205 = vadd.f32 %v55, %v204
  %v206 = vpop.f32.mrb[0].mxu0
  %v207 = vadd.f32 %v51, %v206
  %v208 = vpop.f32.mrb[0].mxu0
  %v209 = vadd.f32 %v55, %v208
  %210 = vmatprep.mubr.bf16.mxu0 0
  %211 = vmatmul.mubr.bf16.gmra.mrb[0].mxu0 %v120
  %v212 = vpop.f32.mrb[0].mxu0
  %v213 = vadd.f32 %v51, %v212
  %v214 = vpop.f32.mrb[0].mxu0
  %v215 = vadd.f32 %v55, %v214
  %v216 = vpop.f32.mrb[0].mxu0
  %v217 = vadd.f32 %v51, %v216
  %v218 = vpop.f32.mrb[0].mxu0
  %v219 = vadd.f32 %v55, %v218
  %220 = vmatprep.mubr.bf16.mxu0 0
  %221 = vmatmul.mubr.bf16.gmra.mrb[0].mxu0 %v123
  %v222 = vpop.f32.mrb[0].mxu0
  %v223 = vadd.f32 %v51, %v222
  %v224 = vpop.f32.mrb[0].mxu0
  %v225 = vadd.f32 %v55, %v224
  %v226 = vpop.f32.mrb[0].mxu0
  %v227 = vadd.f32 %v51, %v226
  %v228 = vpop.f32.mrb[0].mxu0
  %v229 = vadd.f32 %v55, %v228
  %230 = vmatprep.mubr.bf16.mxu0 0
  %231 = vmatmul.mubr.bf16.gmra.mrb[0].mxu0 %v126
  %v232 = vpop.f32.mrb[0].mxu0
  %v233 = vadd.f32 %v51, %v232
  %v234 = vpop.f32.mrb[0].mxu0
  %v235 = vadd.f32 %v55, %v234
  %v236 = vpop.f32.mrb[0].mxu0
  %v237 = vadd.f32 %v51, %v236
  %v238 = vpop.f32.mrb[0].mxu0
  %v239 = vadd.f32 %v55, %v238
  %240 = vmatprep.mubr.bf16.mxu0 0
  %241 = vmatmul.mubr.bf16.gmra.mrb[0].mxu0 %v129
  %v242 = vpop.f32.mrb[0].mxu0
  %v243 = vadd.f32 %v51, %v242
  %v244 = vpop.f32.mrb[0].mxu0
  %v245 = vadd.f32 %v55, %v244
  %v246 = vpop.f32.mrb[0].mxu0
  %v247 = vadd.f32 %v51, %v246
  %v248 = vpop.f32.mrb[0].mxu0
  %v249 = vadd.f32 %v55, %v248
  %250 = vdwg.mxu0
  %v251 = vmax.f32 %v173, 0.0
  %v252 = vmax.f32 %v175, 0.0
  %v253 = vmax.f32 %v177, 0.0
  %v254 = vmax.f32 %v179, 0.0
  %v255 = vmax.f32 %v183, 0.0
  %v256 = vmax.f32 %v185, 0.0
  %v257 = vmax.f32 %v187, 0.0
  %v258 = vmax.f32 %v189, 0.0
  %v259 = vmax.f32 %v193, 0.0
  %v260 = vmax.f32 %v195, 0.0
  %v261 = vmax.f32 %v197, 0.0
  %v262 = vmax.f32 %v199, 0.0
  %v263 = vmax.f32 %v203, 0.0
  %v264 = vmax.f32 %v205, 0.0
  %v265 = vmax.f32 %v207, 0.0
  %v266 = vmax.f32 %v209, 0.0
  %v267 = vmax.f32 %v213, 0.0
  %v268 = vmax.f32 %v215, 0.0
  %v269 = vmax.f32 %v217, 0.0
  %v270 = vmax.f32 %v219, 0.0
  %v271 = vmax.f32 %v223, 0.0
  %v272 = vmax.f32 %v225, 0.0
  %v273 = vmax.f32 %v227, 0.0
  %v274 = vmax.f32 %v229, 0.0
  %v275 = vmax.f32 %v233, 0.0
  %v276 = vmax.f32 %v235, 0.0
  %v277 = vmax.f32 %v237, 0.0
  %v278 = vmax.f32 %v239, 0.0
  %v279 = vmax.f32 %v243, 0.0
  %v280 = vmax.f32 %v245, 0.0
  %v281 = vmax.f32 %v247, 0.0
  %v282 = vmax.f32 %v249, 0.0
  %v283 = vpack.c.bf16 %v253, %v251
  %v284 = vpack.c.bf16 %v254, %v252
  %v285 = vpack.c.bf16 %v257, %v255
  %v286 = vpack.c.bf16 %v258, %v256
  %v287 = vpack.c.bf16 %v261, %v259
  %v288 = vpack.c.bf16 %v262, %v260
  %v289 = vpack.c.bf16 %v265, %v263
  %v290 = vpack.c.bf16 %v266, %v264
  %v291 = vpack.c.bf16 %v269, %v267
  %v292 = vpack.c.bf16 %v270, %v268
  %v293 = vpack.c.bf16 %v273, %v271
  %v294 = vpack.c.bf16 %v274, %v272
  %v295 = vpack.c.bf16 %v277, %v275
  %v296 = vpack.c.bf16 %v278, %v276
  %v297 = vpack.c.bf16 %v281, %v279
  %v298 = vpack.c.bf16 %v282, %v280
  %v299 = vld [vmem:[%s3] sm:$0xff]
  %v300 = vld [vmem:[%s3 + $0x8] sm:$0xff]
  %v301 = vld [vmem:[%s3 + $0x10] sm:$0xff]
  %v302 = vld [vmem:[%s3 + $0x18] sm:$0xff]
  %v303 = vld [vmem:[%s3 + $0x20] sm:$0xff]
  %v304 = vld [vmem:[%s3 + $0x28] sm:$0xff]
  %v305 = vld [vmem:[%s3 + $0x30] sm:$0xff]
  %v306 = vld [vmem:[%s3 + $0x38] sm:$0xff]
  %v307 = vld [vmem:[%s3 + $0x40] sm:$0xff]
  %v308 = vld [vmem:[%s3 + $0x48] sm:$0xff]
  %v309 = vld [vmem:[%s3 + $0x50] sm:$0xff]
  %v310 = vld [vmem:[%s3 + $0x58] sm:$0xff]
  %v311 = vld [vmem:[%s3 + $0x60] sm:$0xff]
  %v312 = vld [vmem:[%s3 + $0x68] sm:$0xff]
  %v313 = vld [vmem:[%s3 + $0x70] sm:$0xff]
  %v314 = vld [vmem:[%s3 + $0x78] sm:$0xff]
  %v315 = vld [vmem:[%s3 + $0x80] sm:$0xff]
  %v316 = vld [vmem:[%s3 + $0x88] sm:$0xff]
  %v317 = vld [vmem:[%s3 + $0x90] sm:$0xff]
  %v318 = vld [vmem:[%s3 + $0x98] sm:$0xff]
  %v319 = vld [vmem:[%s3 + $0xa0] sm:$0xff]
  %v320 = vld [vmem:[%s3 + $0xa8] sm:$0xff]
  %v321 = vld [vmem:[%s3 + $0xb0] sm:$0xff]
  %v322 = vld [vmem:[%s3 + $0xb8] sm:$0xff]
  %v323 = vld [vmem:[%s3 + $0xc0] sm:$0xff]
  %v324 = vld [vmem:[%s3 + $0xc8] sm:$0xff]
  %v325 = vld [vmem:[%s3 + $0xd0] sm:$0xff]
  %v326 = vld [vmem:[%s3 + $0xd8] sm:$0xff]
  %v327 = vld [vmem:[%s3 + $0xe0] sm:$0xff]
  %v328 = vld [vmem:[%s3 + $0xe8] sm:$0xff]
  %v329 = vld [vmem:[%s3 + $0xf0] sm:$0xff]
  %v330 = vld [vmem:[%s3 + $0xf8] sm:$0xff]
  %v331 = vld [vmem:[%s4] sm:$0x3]
  %v333 = vlaneseq
  %v334 = vshrl.u32 %v333, 7
  %v335 = vsub.s32 0, %v334
  %v336 = vrot.slane %v331, %v335
  %v337 = vlaneseq
  %v338 = vshrl.u32 %v337, 7
  %v339 = vsub.s32 1, %v338
  %v340 = vrot.slane %v331, %v339
  %v375 = vunpack.c.l.b16 %v299
  %v376 = vunpack.c.h.b16 %v299
  %v377 = vunpack.c.l.b16 %v300
  %v378 = vunpack.c.h.b16 %v300
  %v379 = vunpack.c.l.b16 %v301
  %v380 = vunpack.c.h.b16 %v301
  %v381 = vunpack.c.l.b16 %v302
  %v382 = vunpack.c.h.b16 %v302
  %v383 = vunpack.c.l.b16 %v303
  %v384 = vunpack.c.h.b16 %v303
  %v385 = vunpack.c.l.b16 %v304
  %v386 = vunpack.c.h.b16 %v304
  %v387 = vunpack.c.l.b16 %v305
  %v388 = vunpack.c.h.b16 %v305
  %v389 = vunpack.c.l.b16 %v306
  %v390 = vunpack.c.h.b16 %v306
  %v391 = vunpack.c.l.b16 %v307
  %v392 = vunpack.c.h.b16 %v307
  %v393 = vunpack.c.l.b16 %v308
  %v394 = vunpack.c.h.b16 %v308
  %v395 = vunpack.c.l.b16 %v309
  %v396 = vunpack.c.h.b16 %v309
  %v397 = vunpack.c.l.b16 %v310
  %v398 = vunpack.c.h.b16 %v310
  %v399 = vunpack.c.l.b16 %v311
  %v400 = vunpack.c.h.b16 %v311
  %v401 = vunpack.c.l.b16 %v312
  %v402 = vunpack.c.h.b16 %v312
  %v403 = vunpack.c.l.b16 %v313
  %v404 = vunpack.c.h.b16 %v313
  %v405 = vunpack.c.l.b16 %v314
  %v406 = vunpack.c.h.b16 %v314
  %v407 = vunpack.c.l.b16 %v315
  %v408 = vunpack.c.h.b16 %v315
  %v409 = vunpack.c.l.b16 %v316
  %v410 = vunpack.c.h.b16 %v316
  %v411 = vunpack.c.l.b16 %v317
  %v412 = vunpack.c.h.b16 %v317
  %v413 = vunpack.c.l.b16 %v318
  %v414 = vunpack.c.h.b16 %v318
  %v415 = vunpack.c.l.b16 %v319
  %v416 = vunpack.c.h.b16 %v319
  %v417 = vunpack.c.l.b16 %v320
  %v418 = vunpack.c.h.b16 %v320
  %v419 = vunpack.c.l.b16 %v321
  %v420 = vunpack.c.h.b16 %v321
  %v421 = vunpack.c.l.b16 %v322
  %v422 = vunpack.c.h.b16 %v322
  %v423 = vunpack.c.l.b16 %v323
  %v424 = vunpack.c.h.b16 %v323
  %v425 = vunpack.c.l.b16 %v324
  %v426 = vunpack.c.h.b16 %v324
  %v427 = vunpack.c.l.b16 %v325
  %v428 = vunpack.c.h.b16 %v325
  %v429 = vunpack.c.l.b16 %v326
  %v430 = vunpack.c.h.b16 %v326
  %v431 = vunpack.c.l.b16 %v327
  %v432 = vunpack.c.h.b16 %v327
  %v433 = vunpack.c.l.b16 %v328
  %v434 = vunpack.c.h.b16 %v328
  %v435 = vunpack.c.l.b16 %v329
  %v436 = vunpack.c.h.b16 %v329
  %v437 = vunpack.c.l.b16 %v330
  %v438 = vunpack.c.h.b16 %v330
  %v439 = vpack.c.b16 %v377, %v375
  %v440 = vpack.c.b16 %v378, %v376
  %v441 = vpack.c.b16 %v381, %v379
  %v442 = vpack.c.b16 %v382, %v380
  %v443 = vpack.c.b16 %v385, %v383
  %v444 = vpack.c.b16 %v386, %v384
  %v445 = vpack.c.b16 %v389, %v387
  %v446 = vpack.c.b16 %v390, %v388
  %v447 = vpack.c.b16 %v393, %v391
  %v448 = vpack.c.b16 %v394, %v392
  %v449 = vpack.c.b16 %v397, %v395
  %v450 = vpack.c.b16 %v398, %v396
  %v451 = vpack.c.b16 %v401, %v399
  %v452 = vpack.c.b16 %v402, %v400
  %v453 = vpack.c.b16 %v405, %v403
  %v454 = vpack.c.b16 %v406, %v404
  %v455 = vpack.c.b16 %v409, %v407
  %v456 = vpack.c.b16 %v410, %v408
  %v457 = vpack.c.b16 %v413, %v411
  %v458 = vpack.c.b16 %v414, %v412
  %v459 = vpack.c.b16 %v417, %v415
  %v460 = vpack.c.b16 %v418, %v416
  %v461 = vpack.c.b16 %v421, %v419
  %v462 = vpack.c.b16 %v422, %v420
  %v463 = vpack.c.b16 %v425, %v423
  %v464 = vpack.c.b16 %v426, %v424
  %v465 = vpack.c.b16 %v429, %v427
  %v466 = vpack.c.b16 %v430, %v428
  %v467 = vpack.c.b16 %v433, %v431
  %v468 = vpack.c.b16 %v434, %v432
  %v469 = vpack.c.b16 %v437, %v435
  %v470 = vpack.c.b16 %v438, %v436
  %503 = vmatprep.subr.bf16.mxu0 %v440
  %504 = vmatpush1.bf16.msra.mxu0 %v439
  %505 = vmatprep.subr.bf16.mxu0 %v442
  %506 = vmatpush1.bf16.msra.mxu0 %v441
  %507 = vmatprep.subr.bf16.mxu0 %v444
  %508 = vmatpush1.bf16.msra.mxu0 %v443
  %509 = vmatprep.subr.bf16.mxu0 %v446
  %510 = vmatpush1.bf16.msra.mxu0 %v445
  %511 = vmatprep.subr.bf16.mxu0 %v448
  %512 = vmatpush1.bf16.msra.mxu0 %v447
  %513 = vmatprep.subr.bf16.mxu0 %v450
  %514 = vmatpush1.bf16.msra.mxu0 %v449
  %515 = vmatprep.subr.bf16.mxu0 %v452
  %516 = vmatpush1.bf16.msra.mxu0 %v451
  %517 = vmatprep.subr.bf16.mxu0 %v454
  %518 = vmatpush1.bf16.msra.mxu0 %v453
  %519 = vmatprep.subr.bf16.mxu0 %v456
  %520 = vmatpush1.bf16.msra.mxu0 %v455
  %521 = vmatprep.subr.bf16.mxu0 %v458
  %522 = vmatpush1.bf16.msra.mxu0 %v457
  %523 = vmatprep.subr.bf16.mxu0 %v460
  %524 = vmatpush1.bf16.msra.mxu0 %v459
  %525 = vmatprep.subr.bf16.mxu0 %v462
  %526 = vmatpush1.bf16.msra.mxu0 %v461
  %527 = vmatprep.subr.bf16.mxu0 %v464
  %528 = vmatpush1.bf16.msra.mxu0 %v463
  %529 = vmatprep.subr.bf16.mxu0 %v466
  %530 = vmatpush1.bf16.msra.mxu0 %v465
  %531 = vmatprep.subr.bf16.mxu0 %v468
  %532 = vmatpush1.bf16.msra.mxu0 %v467
  %533 = vmatprep.subr.bf16.mxu0 %v470
  %534 = vmatpush1.bf16.msra.mxu0 %v469
  %535 = vmatprep.mubr.bf16.mxu0 %v284
  %536 = vmatmul.mubr.bf16.gmra.mrb[0].mxu0 %v283
  %v537 = vpop.f32.mrb[0].mxu0
  %v538 = vadd.f32 %v336, %v537
  %v539 = vpop.f32.mrb[0].mxu0
  %v540 = vadd.f32 %v340, %v539
  %v541 = vpop.f32.mrb[0].mxu0
  %v542 = vadd.f32 %v336, %v541
  %v543 = vpop.f32.mrb[0].mxu0
  %v544 = vadd.f32 %v340, %v543
  %545 = vmatprep.mubr.bf16.mxu0 %v286
  %546 = vmatmul.mubr.bf16.gmra.mrb[0].mxu0 %v285
  %v547 = vpop.f32.mrb[0].mxu0
  %v548 = vadd.f32 %v336, %v547
  %v549 = vpop.f32.mrb[0].mxu0
  %v550 = vadd.f32 %v340, %v549
  %v551 = vpop.f32.mrb[0].mxu0
  %v552 = vadd.f32 %v336, %v551
  %v553 = vpop.f32.mrb[0].mxu0
  %v554 = vadd.f32 %v340, %v553
  %555 = vmatprep.mubr.bf16.mxu0 %v288
  %556 = vmatmul.mubr.bf16.gmra.mrb[0].mxu0 %v287
  %v557 = vpop.f32.mrb[0].mxu0
  %v558 = vadd.f32 %v336, %v557
  %v559 = vpop.f32.mrb[0].mxu0
  %v560 = vadd.f32 %v340, %v559
  %v561 = vpop.f32.mrb[0].mxu0
  %v562 = vadd.f32 %v336, %v561
  %v563 = vpop.f32.mrb[0].mxu0
  %v564 = vadd.f32 %v340, %v563
  %565 = vmatprep.mubr.bf16.mxu0 %v290
  %566 = vmatmul.mubr.bf16.gmra.mrb[0].mxu0 %v289
  %v567 = vpop.f32.mrb[0].mxu0
  %v568 = vadd.f32 %v336, %v567
  %v569 = vpop.f32.mrb[0].mxu0
  %v570 = vadd.f32 %v340, %v569
  %v571 = vpop.f32.mrb[0].mxu0
  %v572 = vadd.f32 %v336, %v571
  %v573 = vpop.f32.mrb[0].mxu0
  %v574 = vadd.f32 %v340, %v573
  %575 = vmatprep.mubr.bf16.mxu0 %v292
  %576 = vmatmul.mubr.bf16.gmra.mrb[0].mxu0 %v291
  %v577 = vpop.f32.mrb[0].mxu0
  %v578 = vadd.f32 %v336, %v577
  %v579 = vpop.f32.mrb[0].mxu0
  %v580 = vadd.f32 %v340, %v579
  %v581 = vpop.f32.mrb[0].mxu0
  %v582 = vadd.f32 %v336, %v581
  %v583 = vpop.f32.mrb[0].mxu0
  %v584 = vadd.f32 %v340, %v583
  %585 = vmatprep.mubr.bf16.mxu0 %v294
  %586 = vmatmul.mubr.bf16.gmra.mrb[0].mxu0 %v293
  %v587 = vpop.f32.mrb[0].mxu0
  %v588 = vadd.f32 %v336, %v587
  %v589 = vpop.f32.mrb[0].mxu0
  %v590 = vadd.f32 %v340, %v589
  %v591 = vpop.f32.mrb[0].mxu0
  %v592 = vadd.f32 %v336, %v591
  %v593 = vpop.f32.mrb[0].mxu0
  %v594 = vadd.f32 %v340, %v593
  %595 = vmatprep.mubr.bf16.mxu0 %v296
  %596 = vmatmul.mubr.bf16.gmra.mrb[0].mxu0 %v295
  %v597 = vpop.f32.mrb[0].mxu0
  %v598 = vadd.f32 %v336, %v597
  %v599 = vpop.f32.mrb[0].mxu0
  %v600 = vadd.f32 %v340, %v599
  %v601 = vpop.f32.mrb[0].mxu0
  %v602 = vadd.f32 %v336, %v601
  %v603 = vpop.f32.mrb[0].mxu0
  %v604 = vadd.f32 %v340, %v603
  %605 = vmatprep.mubr.bf16.mxu0 %v298
  %606 = vmatmul.mubr.bf16.gmra.mrb[0].mxu0 %v297
  %v607 = vpop.f32.mrb[0].mxu0
  %v608 = vadd.f32 %v336, %v607
  %v609 = vpop.f32.mrb[0].mxu0
  %v610 = vadd.f32 %v340, %v609
  %v611 = vpop.f32.mrb[0].mxu0
  %v612 = vadd.f32 %v336, %v611
  %v613 = vpop.f32.mrb[0].mxu0
  %v614 = vadd.f32 %v340, %v613
  %615 = vdwg.mxu0
  %v616 = vmax.f32 %v538, 0.0
  %v617 = vmax.f32 %v540, 0.0
  %v618 = vmax.f32 %v542, 0.0
  %v619 = vmax.f32 %v544, 0.0
  %v620 = vmax.f32 %v548, 0.0
  %v621 = vmax.f32 %v550, 0.0
  %v622 = vmax.f32 %v552, 0.0
  %v623 = vmax.f32 %v554, 0.0
  %v624 = vmax.f32 %v558, 0.0
  %v625 = vmax.f32 %v560, 0.0
  %v626 = vmax.f32 %v562, 0.0
  %v627 = vmax.f32 %v564, 0.0
  %v628 = vmax.f32 %v568, 0.0
  %v629 = vmax.f32 %v570, 0.0
  %v630 = vmax.f32 %v572, 0.0
  %v631 = vmax.f32 %v574, 0.0
  %v632 = vmax.f32 %v578, 0.0
  %v633 = vmax.f32 %v580, 0.0
  %v634 = vmax.f32 %v582, 0.0
  %v635 = vmax.f32 %v584, 0.0
  %v636 = vmax.f32 %v588, 0.0
  %v637 = vmax.f32 %v590, 0.0
  %v638 = vmax.f32 %v592, 0.0
  %v639 = vmax.f32 %v594, 0.0
  %v640 = vmax.f32 %v598, 0.0
  %v641 = vmax.f32 %v600, 0.0
  %v642 = vmax.f32 %v602, 0.0
  %v643 = vmax.f32 %v604, 0.0
  %v644 = vmax.f32 %v608, 0.0
  %v645 = vmax.f32 %v610, 0.0
  %v646 = vmax.f32 %v612, 0.0
  %v647 = vmax.f32 %v614, 0.0
  %v648 = vld [vmem:[%s5] sm:$0x3]
  %v650 = vlaneseq
  %v651 = vshrl.u32 %v650, 7
  %v652 = vsub.s32 0, %v651
  %v653 = vrot.slane %v648, %v652
  %v654 = vlaneseq
  %v655 = vshrl.u32 %v654, 7
  %v656 = vsub.s32 1, %v655
  %v657 = vrot.slane %v648, %v656
  %v660 = vmul.f32 %v616, %v653
  %v661 = vmul.f32 %v617, %v657
  %v662 = vmul.f32 %v618, %v653
  %v663 = vmul.f32 %v619, %v657
  %v664 = vmul.f32 %v620, %v653
  %v665 = vmul.f32 %v621, %v657
  %v666 = vmul.f32 %v622, %v653
  %v667 = vmul.f32 %v623, %v657
  %v668 = vmul.f32 %v624, %v653
  %v669 = vmul.f32 %v625, %v657
  %v670 = vmul.f32 %v626, %v653
  %v671 = vmul.f32 %v627, %v657
  %v672 = vmul.f32 %v628, %v653
  %v673 = vmul.f32 %v629, %v657
  %v674 = vmul.f32 %v630, %v653
  %v675 = vmul.f32 %v631, %v657
  %v676 = vmul.f32 %v632, %v653
  %v677 = vmul.f32 %v633, %v657
  %v678 = vmul.f32 %v634, %v653
  %v679 = vmul.f32 %v635, %v657
  %v680 = vmul.f32 %v636, %v653
  %v681 = vmul.f32 %v637, %v657
  %v682 = vmul.f32 %v638, %v653
  %v683 = vmul.f32 %v639, %v657
  %v684 = vmul.f32 %v640, %v653
  %v685 = vmul.f32 %v641, %v657
  %v686 = vmul.f32 %v642, %v653
  %v687 = vmul.f32 %v643, %v657
  %v688 = vmul.f32 %v644, %v653
  %v689 = vmul.f32 %v645, %v657
  %v690 = vmul.f32 %v646, %v653
  %v691 = vmul.f32 %v647, %v657
  %v692 = vadd.f32 %v660, %v661
  %693 = vadd.xlane.f32.xlu0 %v692
  %v694 = vpop.xlane.xlu0 %693
  %v695 = vadd.f32 %v662, %v663
  %696 = vadd.xlane.f32.xlu0 %v695
  %v697 = vpop.xlane.xlu0 %696
  %v698 = vadd.f32 %v664, %v665
  %699 = vadd.xlane.f32.xlu0 %v698
  %v700 = vpop.xlane.xlu0 %699
  %v701 = vadd.f32 %v666, %v667
  %702 = vadd.xlane.f32.xlu0 %v701
  %v703 = vpop.xlane.xlu0 %702
  %v704 = vadd.f32 %v668, %v669
  %705 = vadd.xlane.f32.xlu0 %v704
  %v706 = vpop.xlane.xlu0 %705
  %v707 = vadd.f32 %v670, %v671
  %708 = vadd.xlane.f32.xlu0 %v707
  %v709 = vpop.xlane.xlu0 %708
  %v710 = vadd.f32 %v672, %v673
  %711 = vadd.xlane.f32.xlu0 %v710
  %v712 = vpop.xlane.xlu0 %711
  %v713 = vadd.f32 %v674, %v675
  %714 = vadd.xlane.f32.xlu0 %v713
  %v715 = vpop.xlane.xlu0 %714
  %v716 = vadd.f32 %v676, %v677
  %717 = vadd.xlane.f32.xlu0 %v716
  %v718 = vpop.xlane.xlu0 %717
  %v719 = vadd.f32 %v678, %v679
  %720 = vadd.xlane.f32.xlu0 %v719
  %v721 = vpop.xlane.xlu0 %720
  %v722 = vadd.f32 %v680, %v681
  %723 = vadd.xlane.f32.xlu0 %v722
  %v724 = vpop.xlane.xlu0 %723
  %v725 = vadd.f32 %v682, %v683
  %726 = vadd.xlane.f32.xlu0 %v725
  %v727 = vpop.xlane.xlu0 %726
  %v728 = vadd.f32 %v684, %v685
  %729 = vadd.xlane.f32.xlu0 %v728
  %v730 = vpop.xlane.xlu0 %729
  %v731 = vadd.f32 %v686, %v687
  %732 = vadd.xlane.f32.xlu0 %v731
  %v733 = vpop.xlane.xlu0 %732
  %v734 = vadd.f32 %v688, %v689
  %735 = vadd.xlane.f32.xlu0 %v734
  %v736 = vpop.xlane.xlu0 %735
  %v737 = vadd.f32 %v690, %v691
  %738 = vadd.xlane.f32.xlu0 %v737
  %v739 = vpop.xlane.xlu0 %738
  %s740 = sld [smem:[#allocation2]]
  %v741 = vstv %s740
  %v742 = vadd.f32 %v694, %v741
  %v743 = vadd.f32 %v697, %v741
  %v744 = vadd.f32 %v700, %v741
  %v745 = vadd.f32 %v703, %v741
  %v746 = vadd.f32 %v706, %v741
  %v747 = vadd.f32 %v709, %v741
  %v748 = vadd.f32 %v712, %v741
  %v749 = vadd.f32 %v715, %v741
  %v750 = vadd.f32 %v718, %v741
  %v751 = vadd.f32 %v721, %v741
  %v752 = vadd.f32 %v724, %v741
  %v753 = vadd.f32 %v727, %v741
  %v754 = vadd.f32 %v730, %v741
  %v755 = vadd.f32 %v733, %v741
  %v756 = vadd.f32 %v736, %v741
  %v757 = vadd.f32 %v739, %v741
  %v774 = vlaneseq
  %v775 = vand.u32 %v774, 127
  %v776 = vlaneseq
  %v777 = vshrl.u32 %v776, 7
  %v778 = vsub.s32 %v775, %v777
  %v779 = vrot.slane %v742, %v778
  %v780 = vadd.s32 %v775, 4294967288
  %v781 = vlaneseq
  %v782 = vshrl.u32 %v781, 7
  %v783 = vsub.s32 %v780, %v782
  %v784 = vrot.slane %v743, %v783
  %vm785 = vcmask 130112
  %v786 = vsel %vm785, %v784, %v779
  %v787 = vadd.s32 %v775, 4294967280
  %v788 = vlaneseq
  %v789 = vshrl.u32 %v788, 7
  %v790 = vsub.s32 %v787, %v789
  %v791 = vrot.slane %v744, %v790
  %vm792 = vcmask 195712
  %v793 = vsel %vm792, %v791, %v786
  %v794 = vadd.s32 %v775, 4294967272
  %v795 = vlaneseq
  %v796 = vshrl.u32 %v795, 7
  %v797 = vsub.s32 %v794, %v796
  %v798 = vrot.slane %v745, %v797
  %vm799 = vcmask 261312
  %v800 = vsel %vm799, %v798, %v793
  %v801 = vadd.s32 %v775, 4294967264
  %v802 = vlaneseq
  %v803 = vshrl.u32 %v802, 7
  %v804 = vsub.s32 %v801, %v803
  %v805 = vrot.slane %v746, %v804
  %vm806 = vcmask 326912
  %v807 = vsel %vm806, %v805, %v800
  %v808 = vadd.s32 %v775, 4294967256
  %v809 = vlaneseq
  %v810 = vshrl.u32 %v809, 7
  %v811 = vsub.s32 %v808, %v810
  %v812 = vrot.slane %v747, %v811
  %vm813 = vcmask 392512
  %v814 = vsel %vm813, %v812, %v807
  %v815 = vadd.s32 %v775, 4294967248
  %v816 = vlaneseq
  %v817 = vshrl.u32 %v816, 7
  %v818 = vsub.s32 %v815, %v817
  %v819 = vrot.slane %v748, %v818
  %vm820 = vcmask 458112
  %v821 = vsel %vm820, %v819, %v814
  %v822 = vadd.s32 %v775, 4294967240
  %v823 = vlaneseq
  %v824 = vshrl.u32 %v823, 7
  %v825 = vsub.s32 %v822, %v824
  %v826 = vrot.slane %v749, %v825
  %vm827 = vcmask 523712
  %v828 = vsel %vm827, %v826, %v821
  %v829 = vadd.s32 %v775, 4294967232
  %v830 = vlaneseq
  %v831 = vshrl.u32 %v830, 7
  %v832 = vsub.s32 %v829, %v831
  %v833 = vrot.slane %v750, %v832
  %vm834 = vcmask 589312
  %v835 = vsel %vm834, %v833, %v828
  %v836 = vadd.s32 %v775, 4294967224
  %v837 = vlaneseq
  %v838 = vshrl.u32 %v837, 7
  %v839 = vsub.s32 %v836, %v838
  %v840 = vrot.slane %v751, %v839
  %vm841 = vcmask 654912
  %v842 = vsel %vm841, %v840, %v835
  %v843 = vadd.s32 %v775, 4294967216
  %v844 = vlaneseq
  %v845 = vshrl.u32 %v844, 7
  %v846 = vsub.s32 %v843, %v845
  %v847 = vrot.slane %v752, %v846
  %vm848 = vcmask 720512
  %v849 = vsel %vm848, %v847, %v842
  %v850 = vadd.s32 %v775, 4294967208
  %v851 = vlaneseq
  %v852 = vshrl.u32 %v851, 7
  %v853 = vsub.s32 %v850, %v852
  %v854 = vrot.slane %v753, %v853
  %vm855 = vcmask 786112
  %v856 = vsel %vm855, %v854, %v849
  %v857 = vadd.s32 %v775, 4294967200
  %v858 = vlaneseq
  %v859 = vshrl.u32 %v858, 7
  %v860 = vsub.s32 %v857, %v859
  %v861 = vrot.slane %v754, %v860
  %vm862 = vcmask 851712
  %v863 = vsel %vm862, %v861, %v856
  %v864 = vadd.s32 %v775, 4294967192
  %v865 = vlaneseq
  %v866 = vshrl.u32 %v865, 7
  %v867 = vsub.s32 %v864, %v866
  %v868 = vrot.slane %v755, %v867
  %vm869 = vcmask 917312
  %v870 = vsel %vm869, %v868, %v863
  %v871 = vadd.s32 %v775, 4294967184
  %v872 = vlaneseq
  %v873 = vshrl.u32 %v872, 7
  %v874 = vsub.s32 %v871, %v873
  %v875 = vrot.slane %v756, %v874
  %vm876 = vcmask 982912
  %v877 = vsel %vm876, %v875, %v870
  %v878 = vadd.s32 %v775, 4294967176
  %v879 = vlaneseq
  %v880 = vshrl.u32 %v879, 7
  %v881 = vsub.s32 %v878, %v880
  %v882 = vrot.slane %v757, %v881
  %vm883 = vcmask 1048512
  %v884 = vsel %vm883, %v882, %v877
  %886 = vst [vmem:[%s7] sm:$0x1] %v884
  // Predicated region
  $region30: #{qvalue_forward.1} parent=0 // pred_check
    _
  $region31: #{qvalue_forward.1} parent=0 // pred_check_branch
    %888 = sbr.rel (0) target = $region33
  $region32: #{qvalue_forward.1} parent=0 // pred_region
    _
  $region33: #{qvalue_forward.1} parent=0 // pred_fallthru
    _
  // Predicated region
  $region34: #{qvalue_forward.1} parent=0 // pred_check
    _
  $region35: #{qvalue_forward.1} parent=0 // pred_check_branch
    %890 = sbr.rel (0) target = $region37
  $region36: #{qvalue_forward.1} parent=0 // pred_region
    _
  $region37: #{qvalue_forward.1} parent=0 // pred_fallthru
    _

</llo_original>
